<compile_context>
chip_gen: v5e
topology: v5e:2x2
jax: 0.10.0
libtpu: 0.0.40
codegen_flags: <defaults>
</compile_context>

<pallas_src>
import math
import functools

import jax
import jax.numpy as jnp
from jax.experimental import pallas as pl
from jax.experimental.pallas import tpu as pltpu

LANE = 128


def _round_up(x, m):
    return ((x + m - 1) // m) * m


def _pick_tile(n, t_max):
    """Largest 8-aligned divisor of n that is <= t_max (or n itself if n <= t_max)."""
    if n <= t_max:
        return n
    start = t_max - (t_max % 8)
    for t in range(start, 7, -8):
        if n % t == 0:
            return t
    return n  # no aligned divisor; fall back to a single full-extent tile


def _device_kind():
    try:
        return jax.devices()[0].device_kind.lower()
    except Exception:
        return ""


def _vmem_capacity_bytes():
    try:
        return int(pltpu.get_tpu_info().vmem_capacity_bytes)
    except Exception:
        return 64 * 2 ** 20  # conservative (v7x-sized) fallback


# --------------------------------------------------------------------------
# Stage 1: one-shot linear projection kernel (x @ w + b -> bf16), weights
# resident, rows streamed.  Runs exactly once per Q / K / V tensor.
# --------------------------------------------------------------------------
def _linear_kernel(x_ref, w_ref, b_ref, o_ref):
    o_ref[...] = (jnp.dot(x_ref[...], w_ref[...],
                          preferred_element_type=jnp.float32)
                  + b_ref[...]).astype(o_ref.dtype)


def _project(x2d, w, b, *, vmem_usable, tm_max=512):
    M, dim_in = x2d.shape
    dout = w.shape[1]
    tm = _pick_tile(M, tm_max)

    est = (2 * tm * dim_in * 2        # x tiles (bf16, double-buffered)
           + 2 * dim_in * dout * 2    # weights (bf16; Pallas allocates 2 bufs)
           + 2 * dout * 4             # bias (f32)
           + 2 * tm * dout * 2)       # output tiles (bf16)
    vmem_limit = int(min(max(2 * est, 32 * 2 ** 20), vmem_usable))

    return pl.pallas_call(
        _linear_kernel,
        out_shape=jax.ShapeDtypeStruct((M, dout), jnp.bfloat16),
        grid_spec=pltpu.PrefetchScalarGridSpec(
            num_scalar_prefetch=0,
            grid=(M // tm,),
            in_specs=[
                pl.BlockSpec((tm, dim_in), lambda i: (i, 0)),
                pl.BlockSpec((dim_in, dout), lambda i: (0, 0)),
                pl.BlockSpec((1, dout), lambda i: (0, 0)),
            ],
            out_specs=pl.BlockSpec((tm, dout), lambda i: (i, 0)),
        ),
        compiler_params=pltpu.CompilerParams(
            dimension_semantics=("parallel",),
            vmem_limit_bytes=vmem_limit,
        ),
    )(x2d, w, b)


# --------------------------------------------------------------------------
# Stage 2: flash attention over the pre-projected bf16 tensors.
# --------------------------------------------------------------------------
def _flash_kernel(q_ref, k_ref, v_ref, o_ref, m_sc, l_sc, acc_sc,
                  *, mask: bool, tq: int, tkv: int, bf16_exp: bool):
    qi = pl.program_id(1)
    kv = pl.program_id(2)

    @pl.when(kv == 0)
    def _init():
        m_sc[...] = jnp.full(m_sc.shape, -jnp.inf, m_sc.dtype)
        l_sc[...] = jnp.zeros(l_sc.shape, l_sc.dtype)
        acc_sc[...] = jnp.zeros(acc_sc.shape, acc_sc.dtype)

    def scores():
        # (tq, dqp) x (tkv, dqp) -> (tq, tkv): contract last axes directly on
        # the MXU (no kp.T / XLU transpose), f32 accumulation.
        return jax.lax.dot_general(
            q_ref[0], k_ref[0],
            dimension_numbers=(((1,), (1,)), ((), ())),
            preferred_element_type=jnp.float32)

    def update(s):
        m_prev = m_sc[...]
        m_new = jnp.maximum(m_prev, jnp.max(s, axis=-1, keepdims=True))
        alpha = jnp.exp(m_prev - m_new)
        if bf16_exp:
            # v6e/v7x: bf16 exp ~doubles EUP throughput; p was going to bf16
            # for the PV matmul anyway.  Denominator still summed in f32.
            p = jnp.exp((s - m_new).astype(jnp.bfloat16))
            row_sum = jnp.sum(p.astype(jnp.float32), axis=-1, keepdims=True)
        else:
            # v5e: no bf16 EUP path -- keep exp in f32.
            p32 = jnp.exp(s - m_new)
            p = p32.astype(jnp.bfloat16)
            row_sum = jnp.sum(p32, axis=-1, keepdims=True)
        l_sc[...] = alpha * l_sc[...] + row_sum
        acc_sc[...] = alpha * acc_sc[...] + jnp.dot(
            p, v_ref[0], preferred_element_type=jnp.float32)
        m_sc[...] = m_new

    if mask:
        row0 = qi * tq
        row_last = row0 + (tq - 1)
        col0 = kv * tkv
        col_last = col0 + (tkv - 1)
        any_visible = col0 <= row_last      # tile has at least one live score
        fully_visible = col_last <= row0    # tile entirely at/below the diagonal

        @pl.when(fully_visible)
        def _no_mask_tile():                # no iota / compare / select needed
            update(scores())

        @pl.when(jnp.logical_and(any_visible, jnp.logical_not(fully_visible)))
        def _diag_tile():                   # tile straddles the diagonal
            s = scores()
            row = row0 + jax.lax.broadcasted_iota(jnp.int32, (tq, tkv), 0)
            col = col0 + jax.lax.broadcasted_iota(jnp.int32, (tq, tkv), 1)
            update(jnp.where(col > row, -jnp.inf, s))
        # fully-masked tiles: skip all compute
    else:
        update(scores())

    @pl.when(kv == pl.num_programs(2) - 1)
    def _finalize():
        o_ref[0] = (acc_sc[...] *
                    pl.reciprocal(l_sc[...], approx=True)).astype(o_ref.dtype)


def attention_head(Q, K, V, params, *, mask: bool = False,
                   out_dtype=jnp.bfloat16, tq_max: int = 512,
                   tkv_max: int = 1024):
    """Pallas implementation of AttentionHead.forward(Q, K, V)."""
    B, S, dim_in = Q.shape
    wq, bq = params["wq"], params["bq"]   # (dim_in, dim_q), (1, dim_q)
    wk, bk = params["wk"], params["bk"]
    wv, bv = params["wv"], params["bv"]   # (dim_in, dim_v), (1, dim_v)
    dim_q = wq.shape[1]
    dim_v = wv.shape[1]

    kind = _device_kind()
    is_v7 = "7" in kind
    bf16_exp = not any(f"v{g}" in kind for g in (2, 3, 4, 5))
    vmem_usable = int(0.8 * _vmem_capacity_bytes())   # leave compiler headroom

    # Lane-dense projection widths (zero columns are exact no-ops for scores /
    # softmax / output; padding is sliced off at the end only if needed).
    dqp = _round_up(dim_q, LANE)
    dvp = _round_up(dim_v, LANE)

    scale = 1.0 / math.sqrt(dim_q)        # folded into the Q projection (free)

    def pad_cols(a, width):
        return jnp.pad(a, ((0, 0), (0, width - a.shape[1])))

    wq_p = pad_cols(wq * scale, dqp).astype(jnp.bfloat16)
    wk_p = pad_cols(wk, dqp).astype(jnp.bfloat16)
    wv_p = pad_cols(wv, dvp).astype(jnp.bfloat16)
    bq_p = pad_cols(bq * scale, dqp).astype(jnp.float32)
    bk_p = pad_cols(bk, dqp).astype(jnp.float32)
    bv_p = pad_cols(bv, dvp).astype(jnp.float32)

    # --- Stage 1: Q/K/V projections, each run exactly once. -----------------
    Qp = _project(Q.reshape(B * S, dim_in).astype(jnp.bfloat16), wq_p, bq_p,
                  vmem_usable=vmem_usable).reshape(B, S, dqp)
    Kp = _project(K.reshape(B * S, dim_in).astype(jnp.bfloat16), wk_p, bk_p,
                  vmem_usable=vmem_usable).reshape(B, S, dqp)
    Vp = _project(V.reshape(B * S, dim_in).astype(jnp.bfloat16), wv_p, bv_p,
                  vmem_usable=vmem_usable).reshape(B, S, dvp)

    # --- Stage 2: flash attention over the pre-projected tensors. -----------
    tq = _pick_tile(S, tq_max)
    tkv = _pick_tile(S, tkv_max)
    out_bytes = jnp.dtype(out_dtype).itemsize

    def est(tq_, tkv_):
        return (2 * tq_ * dqp * 2            # Q tiles (bf16, double-buffered)
                + 2 * tkv_ * dqp * 2         # K tiles
                + 2 * tkv_ * dvp * 2         # V tiles
                + 2 * tq_ * dvp * out_bytes  # output tiles
                + 2 * tq_ * 4 * 2            # running max / denom (f32)
                + tq_ * dvp * 4)             # accumulator (f32)

    budget = vmem_usable // 2
    while est(tq, tkv) > budget and tkv % 16 == 0 and tkv > 128:
        tkv //= 2
    while est(tq, tkv) > budget and tq % 16 == 0 and tq > 128:
        tq //= 2

    # v7x megacore: make sure both TensorCores get at least one (b, qi) tile.
    if is_v7 and B * (S // tq) < 2 and tq % 16 == 0:
        tq //= 2

    nq, nkv = S // tq, S // tkv
    vmem_limit = int(min(max(2 * est(tq, tkv), 32 * 2 ** 20), vmem_usable))

    kernel = functools.partial(_flash_kernel, mask=mask, tq=tq, tkv=tkv,
                               bf16_exp=bf16_exp)

    out_padded = pl.pallas_call(
        kernel,
        out_shape=jax.ShapeDtypeStruct((B, S, dvp), out_dtype),
        grid_spec=pltpu.PrefetchScalarGridSpec(
            num_scalar_prefetch=0,
            grid=(B, nq, nkv),
            in_specs=[
                pl.BlockSpec((1, tq, dqp), lambda b, qi, kv: (b, qi, 0)),
                pl.BlockSpec((1, tkv, dqp), lambda b, qi, kv: (b, kv, 0)),
                pl.BlockSpec((1, tkv, dvp), lambda b, qi, kv: (b, kv, 0)),
            ],
            out_specs=pl.BlockSpec((1, tq, dvp), lambda b, qi, kv: (b, qi, 0)),
            scratch_shapes=[
                pltpu.VMEM((tq, 1), jnp.float32),    # running max
                pltpu.VMEM((tq, 1), jnp.float32),    # running denom
                pltpu.VMEM((tq, dvp), jnp.float32),  # output accumulator
            ],
        ),
        compiler_params=pltpu.CompilerParams(
            dimension_semantics=("parallel", "parallel", "arbitrary"),
            vmem_limit_bytes=vmem_limit,
        ),
    )(Qp, Kp, Vp)

    if dvp == dim_v:
        return out_padded
    return out_padded[:, :, :dim_v]


def init_params(key, dim_in, dim_q, dim_v):
    """nn.Linear-style init (uniform(-1/sqrt(fan_in), 1/sqrt(fan_in)))."""
    ks = jax.random.split(key, 6)
    bound = 1.0 / math.sqrt(dim_in)
    u = lambda k, shape: jax.random.uniform(k, shape, jnp.float32, -bound, bound)
    # Weights stored pre-transposed to (in, out); padding/scaling done in wrapper.
    return {
        "wq": u(ks[0], (dim_in, dim_q)), "bq": u(ks[1], (1, dim_q)),
        "wk": u(ks[2], (dim_in, dim_q)), "bk": u(ks[3], (1, dim_q)),
        "wv": u(ks[4], (dim_in, dim_v)), "bv": u(ks[5], (1, dim_v)),
    }


def attention_head_ref(Q, K, V, params, *, mask: bool = False):
    """Pure-JAX f32 reference matching the PyTorch forward."""
    qp = Q @ params["wq"] + params["bq"]
    kp = K @ params["wk"] + params["bk"]
    vp = V @ params["wv"] + params["bv"]
    scores = jnp.einsum("bqd,bkd->bqk", qp, kp) / math.sqrt(kp.shape[2])
    if mask:
        S = scores.shape[1]
        causal = jnp.triu(jnp.ones((S, S), bool), k=1)
        scores = jnp.where(causal[None], -jnp.inf, scores)
    p = jax.nn.softmax(scores, axis=2)
    return jnp.einsum("bqk,bkv->bqv", p, vp)


if __name__ == "__main__":
    B, S, dim_in, dim_q, dim_v = 2, 8, 32, 16, 16

    key = jax.random.PRNGKey(0)
    kq, kk, kv_, kp = jax.random.split(key, 4)
    Q = jax.random.normal(kq, (B, S, dim_in), jnp.float32)
    K = jax.random.normal(kk, (B, S, dim_in), jnp.float32)
    V = jax.random.normal(kv_, (B, S, dim_in), jnp.float32)
    params = init_params(kp, dim_in, dim_q, dim_v)

    ok = True
    for use_mask in (False, True):
        out = attention_head(Q, K, V, params, mask=use_mask)
        out = jax.block_until_ready(out)
        ref = attention_head_ref(Q, K, V, params, mask=use_mask)
        assert out.shape == (B, S, dim_v)
        # bf16 MXU operands + bf16 output -> loose tolerance vs f32 reference.
        ok = ok and bool(jnp.allclose(out.astype(jnp.float32), ref,
                                      atol=2.5e-2, rtol=2.5e-2))

    assert ok, "mismatch vs reference"
    print("KERNEL_OK")
</pallas_src>

<mosaic_0001>
module attributes {stable_mosaic.version = 11 : i64} {
  func.func @_linear_kernel(%arg0: i32, %arg1: memref<16x32xbf16, #tpu.memory_space<vmem>>, %arg2: memref<32x128xbf16, #tpu.memory_space<vmem>>, %arg3: memref<1x128xf32, #tpu.memory_space<vmem>>, %arg4: memref<16x128xbf16, #tpu.memory_space<vmem>>) attributes {dimension_semantics = [#tpu.dimension_semantics<parallel>], iteration_bounds = array<i64: 1>, scalar_prefetch = 0 : i64, scratch_operands = 0 : i64, tpu.core_type = #tpu.core_type<tc>, window_params = [{transform_indices = @transform_0, window_bounds = array<i64: 16, 32>}, {pipeline_mode = #tpu.pipeline_mode<synchronous>, transform_indices = @transform_1, window_bounds = array<i64: 32, 128>}, {pipeline_mode = #tpu.pipeline_mode<synchronous>, transform_indices = @transform_2, window_bounds = array<i64: 1, 128>}, {transform_indices = @transform_3, window_bounds = array<i64: 16, 128>}]} {
    %c0 = arith.constant 0 : index
    %c0_0 = arith.constant 0 : index
    %0 = vector.load %arg1[%c0, %c0_0] : memref<16x32xbf16, #tpu.memory_space<vmem>>, vector<16x32xbf16>
    %c0_1 = arith.constant 0 : index
    %c0_2 = arith.constant 0 : index
    %1 = vector.load %arg2[%c0_1, %c0_2] : memref<32x128xbf16, #tpu.memory_space<vmem>>, vector<32x128xbf16>
    %cst = arith.constant dense<0.000000e+00> : vector<16x128xf32>
    %2 = tpu.matmul %0, %1, %cst {dimension_numbers = #tpu.dot_dimension_numbers<[1], [0], [0], [1], [0, 0, 1, 1], [], []>} : vector<16x32xbf16>, vector<32x128xbf16>, vector<16x128xf32> -> vector<16x128xf32>
    %c0_3 = arith.constant 0 : index
    %c0_4 = arith.constant 0 : index
    %3 = vector.load %arg3[%c0_3, %c0_4] : memref<1x128xf32, #tpu.memory_space<vmem>>, vector<1x128xf32>
    %4 = vector.broadcast %3 : vector<1x128xf32> to vector<16x128xf32>
    %5 = arith.addf %2, %4 : vector<16x128xf32>
    %6 = arith.truncf %5 : vector<16x128xf32> to vector<16x128xbf16>
    %c0_5 = arith.constant 0 : index
    %c0_6 = arith.constant 0 : index
    %7 = vector.load %arg4[%c0_5, %c0_6] : memref<16x128xbf16, #tpu.memory_space<vmem>>, vector<16x128xbf16>
    tpu.vector_store %arg4[%c0_5, %c0_6], %6 {strides = array<i32>} : memref<16x128xbf16, #tpu.memory_space<vmem>>, vector<16x128xbf16>,
    return
  }
  func.func @transform_0(%arg0: i32) -> (i32, i32) {
    %c0_i32 = arith.constant 0 : i32
    %c0_i32_0 = arith.constant 0 : i32
    return %arg0, %c0_i32 : i32, i32
  }
  func.func @transform_1(%arg0: i32) -> (i32, i32) {
    %c0_i32 = arith.constant 0 : i32
    %c0_i32_0 = arith.constant 0 : i32
    %c0_i32_1 = arith.constant 0 : i32
    return %c0_i32, %c0_i32_0 : i32, i32
  }
  func.func @transform_2(%arg0: i32) -> (i32, i32) {
    %c0_i32 = arith.constant 0 : i32
    %c0_i32_0 = arith.constant 0 : i32
    %c0_i32_1 = arith.constant 0 : i32
    return %c0_i32, %c0_i32_0 : i32, i32
  }
  func.func @transform_3(%arg0: i32) -> (i32, i32) {
    %c0_i32 = arith.constant 0 : i32
    %c0_i32_0 = arith.constant 0 : i32
    return %arg0, %c0_i32 : i32, i32
  }
}

</mosaic_0001>

<llo_original>
// kernel: tpu_custom_call.1
$region0: #{tpu_custom_call.1}
  #allocation0 [shape = 'u32[]', space=smem, size = 0x4, offset = 0x4, fixed_abs, tag = 'smem constant byte address 0x4 - core index']
  #allocation1 [shape = 'u32[72,128]{1,0:T(1,128)}', space=vmem, size = 0x9000, scoped, tag = 'internal scratch']
  %s0 = inlined_call_operand.hbm [shape: bf16[16,32], index: 0, kind: input, shape index: {}]
  %s1 = inlined_call_operand.hbm [shape: bf16[32,128], index: 1, kind: input, shape index: {}]
  %s2 = inlined_call_operand.vmem [shape: f32[1,128], index: 2, kind: input, shape index: {}]
  %s3 = inlined_call_operand.hbm [shape: bf16[16,128], index: 3, kind: output, shape index: {}]
  %s4 = sld [smem:[#allocation0]]
  $region30: #{tpu_custom_call.1} parent=0
    _
  %s6 = ssub.s32 1, %s4
  %s7 = scalar_select 0, %s6, %s4
  $region1: #{tpu_custom_call.1} parent=0
    #allocation2 [shape = 'u8[4096]{0}', space=vmem, size = 0x1000, scoped, tag = 'input window, operand 0, single buffered']
    #allocation3 [shape = 's32[1]{0}', space=sflag, size = 0x4, scoped, tag = 'scoped memory for tpu_custom_call.1']
    #allocation4 [shape = 's32[1]{0}', space=sflag, size = 0x4, scoped, tag = 'scoped memory for tpu_custom_call.1']
    #allocation5 [shape = 'u8[8192]{0}', space=vmem, size = 0x2000, scoped, tag = 'input window, operand 1, single buffered']
    #allocation6 [shape = 's32[1]{0}', space=sflag, size = 0x4, scoped, tag = 'scoped memory for tpu_custom_call.1']
    #allocation7 [shape = 'u8[4096]{0}', space=vmem, size = 0x1000, scoped, tag = 'output window, operand 0, single buffered']
    %8 = vsyncpa [#allocation3], 0
    %9 = vsyncpa [#allocation6], 0
    %10 = vsyncpa [#allocation4], 0
    // Predicated region
    $region2: #{tpu_custom_call.1} parent=1 // pred_check
      _
    $region3: #{tpu_custom_call.1} parent=1 // pred_check_branch
      %12 = sbr.rel (0) target = $region5
    $region4: #{tpu_custom_call.1} parent=1 // pred_region
      %14 = vsyncadd [#allocation3], 0
      %s15 = sshll.u32 %s0, 4
      %s16 = int_to_ptr.hbm [resolvable:$true] %s15
      %s17 = sshll.u32 [#allocation2], 4
      %s18 = int_to_ptr.vmem [resolvable:$true] %s17
      %23 = dma.hbm_to_vmem [thread:$0]  %s16, 128, %s18, [#allocation3], 64, 64, 4
    $region5: #{tpu_custom_call.1} parent=1 // pred_fallthru
      _
    // Predicated region
    $region6: #{tpu_custom_call.1} parent=1 // pred_check
      _
    $region7: #{tpu_custom_call.1} parent=1 // pred_check_branch
      %25 = sbr.rel (0) target = $region9
    $region8: #{tpu_custom_call.1} parent=1 // pred_region
      %27 = vsyncadd [#allocation6], 0
      %s28 = sshll.u32 %s1, 4
      %s29 = int_to_ptr.hbm [resolvable:$true] %s28
      %s30 = sshll.u32 [#allocation5], 4
      %s31 = int_to_ptr.vmem [resolvable:$true] %s30
      %36 = dma.hbm_to_vmem [thread:$0]  %s29, 256, %s31, [#allocation6], 64, 64, 4
    $region9: #{tpu_custom_call.1} parent=1 // pred_fallthru
      _
    // Predicated region
    $region10: #{tpu_custom_call.1} parent=1 // pred_check
      _
    $region11: #{tpu_custom_call.1} parent=1 // pred_check_branch
      %38 = sbr.rel (0) target = $region13
    $region12: #{tpu_custom_call.1} parent=1 // pred_region
      _
    $region13: #{tpu_custom_call.1} parent=1 // pred_fallthru
      _
    // Predicated region
    $region14: #{tpu_custom_call.1} parent=1 // pred_check
      _
    $region15: #{tpu_custom_call.1} parent=1 // pred_check_branch
      %40 = sbr.rel (0) target = $region17
    $region16: #{tpu_custom_call.1} parent=1 // pred_region
      %42 = dma.done [#allocation3], 128
    $region17: #{tpu_custom_call.1} parent=1 // pred_fallthru
      _
    // Predicated region
    $region18: #{tpu_custom_call.1} parent=1 // pred_check
      _
    $region19: #{tpu_custom_call.1} parent=1 // pred_check_branch
      %44 = sbr.rel (0) target = $region21
    $region20: #{tpu_custom_call.1} parent=1 // pred_region
      %46 = dma.done [#allocation6], 256
    $region21: #{tpu_custom_call.1} parent=1 // pred_fallthru
      _
    %v48 = vld [vmem:[#allocation2] sm:$0xf]
    %v49 = vld [vmem:[#allocation2 + $0x4] sm:$0xf]
    %v50 = vld [vmem:[#allocation5] sm:$0xf]
    %v51 = vld [vmem:[#allocation5 + $0x4] sm:$0xf]
    %v52 = vld [vmem:[#allocation5 + $0x8] sm:$0xf]
    %v53 = vld [vmem:[#allocation5 + $0xc] sm:$0xf]
    %v54 = vld [vmem:[%s2] sm:$0x1]
    %v56 = vperm.slane %v54, 0
    %v60 = vunpack.c.l.b16 %v48
    %v61 = vunpack.c.l.b16 %v49
    %v62 = vpack.c.b16 %v61, %v60
    %v67 = vunpack.c.l.b16 %v50
    %v68 = vunpack.c.l.b16 %v51
    %v69 = vunpack.c.l.b16 %v52
    %v70 = vunpack.c.l.b16 %v53
    %v71 = vpack.c.b16 %v68, %v67
    %v72 = vpack.c.b16 %v70, %v69
    %vm75 = vcmask 261120
    %v77 = vsel %vm75, %v62, 0
    %79 = vmatpush.bf16.msra.mxu0 0
    %80 = vmatpush.bf16.msra.mxu0 0
    %81 = vmatpush.bf16.msra.mxu0 0
    %82 = vmatpush.bf16.msra.mxu0 0
    %83 = vmatpush.bf16.msra.mxu0 0
    %84 = vmatpush.bf16.msra.mxu0 0
    %85 = vmatpush.bf16.msra.mxu0 %v72
    %86 = vmatpush.bf16.msra.mxu0 %v71
    %87 = vmatmul.bf16.gmra.mxu0 %v77
    %v88 = vpop.f32.mrf.mxu0
    %v89 = vadd.f32 %v56, %v88
    %v90 = vpop.f32.mrf.mxu0
    %v91 = vadd.f32 %v56, %v90
    %92 = vdwg.mxu0
    %v93 = vpack.c.bf16 %v89, %v89
    %v94 = vpack.c.bf16 %v91, %v91
    %95 = vst [vmem:[#allocation7] sm:$0xf] %v93
    %96 = vst [vmem:[#allocation7 + $0x4] sm:$0xf] %v94
    // Predicated region
    $region22: #{tpu_custom_call.1} parent=1 // pred_check
      _
    $region23: #{tpu_custom_call.1} parent=1 // pred_check_branch
      %98 = sbr.rel (0) target = $region25
    $region24: #{tpu_custom_call.1} parent=1 // pred_region
      %100 = vsyncadd [#allocation4], 0
      %s101 = sshll.u32 [#allocation7], 4
      %s102 = int_to_ptr.vmem [resolvable:$true] %s101
      %s103 = sshll.u32 %s3, 4
      %s104 = int_to_ptr.hbm [resolvable:$true] %s103
      %109 = dma.vmem_to_hbm [thread:$0]  %s102, 128, %s104, [#allocation4], 64, 64, 4
    $region25: #{tpu_custom_call.1} parent=1 // pred_fallthru
      _
    // Predicated region
    $region26: #{tpu_custom_call.1} parent=1 // pred_check
      _
    $region27: #{tpu_custom_call.1} parent=1 // pred_check_branch
      %111 = sbr.rel (0) target = $region29
    $region28: #{tpu_custom_call.1} parent=1 // pred_region
      %113 = dma.done [#allocation4], 128
    $region29: #{tpu_custom_call.1} parent=1 // pred_fallthru
      _
    %114 = vsyncpa [#allocation3], 1
    %115 = vsyncpa [#allocation6], 1
    %116 = vsyncpa [#allocation4], 1

</llo_original>
